<compile_context>
chip_gen: v7x
topology: tpu7x:2x2x1
jax: 0.10.0
libtpu: 0.0.40
codegen_flags: <defaults>
</compile_context>

<pallas_src>
import functools

import jax
import jax.numpy as jnp
from jax.experimental import pallas as pl
from jax.experimental.pallas import tpu as pltpu


def _round_up(x, m):
    return (x + m - 1) // m * m


# ---------------------------------------------------------------------------
# Kernel bodies
# ---------------------------------------------------------------------------

def _bottleneck_bn2(x2d, w1, b1, s2, sh2):
    """ReLU -> (BN1-folded) 1x1 conv -> ReLU -> BN2 on one (C_in, W) slab."""
    r = jnp.maximum(x2d, 0.0)
    h = jnp.dot(w1, r, preferred_element_type=jnp.float32) + b1
    return jnp.maximum(h, 0.0) * s2 + sh2


def dense_small_kernel(x_ref, w1_ref, b1_ref, s2_ref, sh2_ref, w2s_ref,
                       b2_ref, out_ref, *, k, pad_l, nb):
    """Whole-sequence variant for seq_len < 128 (lane dim = exact seq_len).

    x_ref   : (NB, C_in, L)
    w1_ref  : (C_bp, C_in)     BN1 folded into the 1x1 conv
    b1_ref  : (C_bp, 1)
    s2_ref  : (C_bp, 1)        BN2 scale / shift
    sh2_ref : (C_bp, 1)
    w2s_ref : (C_out, k*C_bp)  tap-stacked conv weight
    b2_ref  : (C_out, 1)
    out_ref : (NB, C_in + C_out, L)
    """
    c_in = x_ref.shape[1]
    seq = x_ref.shape[2]

    w1 = w1_ref[...]
    b1 = b1_ref[...]
    s2 = s2_ref[...]
    sh2 = sh2_ref[...]
    w2s = w2s_ref[...]
    b2 = b2_ref[...]

    # Shift matrices S_d[m, l] = (m == l + d): v @ S_d shifts v by d along the
    # lane axis with zero fill ('same' padding) as a tiny MXU matmul, avoiding
    # sub-128-wide lane rolls/concats for short sequences.  Hoisted out of the
    # batch loop (built once).
    row = jax.lax.broadcasted_iota(jnp.int32, (seq, seq), 0)
    col = jax.lax.broadcasted_iota(jnp.int32, (seq, seq), 1)
    shift_mats = []
    for t in range(k):
        d = t - pad_l
        shift_mats.append(None if d == 0
                          else (row == col + d).astype(jnp.float32))

    for bi in range(nb):                                  # static, small NB
        x2d = x_ref[bi]                                   # (C_in, L)
        v = _bottleneck_bn2(x2d, w1, b1, s2, sh2)         # (C_bp, L)
        slabs = [v if s_mat is None
                 else jnp.dot(v, s_mat, preferred_element_type=jnp.float32)
                 for s_mat in shift_mats]
        stacked = jnp.concatenate(slabs, axis=0)          # (k*C_bp, L)
        acc = jnp.dot(w2s, stacked,
                      preferred_element_type=jnp.float32) + b2
        # concat([x, conv_out], channel axis) as two lane-dense slice stores.
        out_ref[bi, :c_in, :] = x2d.astype(out_ref.dtype)
        # NOTE: if C_in % 8 != 0 this store starts at a misaligned sublane
        # offset (masked store) -- pad/reorder channels upstream to avoid it.
        out_ref[bi, c_in:, :] = acc.astype(out_ref.dtype)


def dense_tiled_kernel(xl_ref, x_ref, xr_ref, w1_ref, b1_ref, s2_ref, sh2_ref,
                       w2s_ref, b2_ref, out_ref, *, k, pad_l, seq_len, l_tile,
                       nb):
    """L-tiled variant (seq_len >= 128): each grid step handles one L tile plus
    a 128-lane halo block on each side so 'same' padding across tile borders is
    exact, for NB batch elements.

    xl_ref / xr_ref : (NB, C_in, 128)   left / right halo lane blocks
    x_ref           : (NB, C_in, Lt)
    out_ref         : (NB, C_in + C_out, Lt)
    """
    j = pl.program_id(1)
    c_in = x_ref.shape[1]
    lt = l_tile
    w = lt + 256                           # halo | tile | halo (mult. of 128)
    base = j * lt - 128                    # global column of local column 0

    w1 = w1_ref[...]
    b1 = b1_ref[...]
    s2 = s2_ref[...]
    sh2 = sh2_ref[...]
    w2s = w2s_ref[...]
    b2 = b2_ref[...]

    c_bp = w1.shape[0]
    col = jax.lax.broadcasted_iota(jnp.int32, (c_bp, w), 1)   # hoisted
    valid = ((base + col) >= 0) & ((base + col) < seq_len)

    for bi in range(nb):                                      # static, small NB
        # 128-aligned lane concat: [left halo | tile | right halo].
        x_ext = jnp.concatenate([xl_ref[bi], x_ref[bi], xr_ref[bi]], axis=1)
        v = _bottleneck_bn2(x_ext, w1, b1, s2, sh2)           # (C_bp, w)
        # Zero everything outside [0, seq_len): the left halo of tile 0 (torch
        # zero-pads AFTER BN, so BN2(relu(0)) would be wrong), the right halo
        # past the sequence end, and the stale lane tail of a partial last
        # tile.  For interior tiles this select is pure VPU filler.
        v = jnp.where(valid, v, 0.0)

        # Tap slabs: roll the halo-extended slab (width multiple of 128) and
        # take the lane-aligned centre window; wrapped lanes never reach the
        # kept window because |tap offset| <= 128.
        slabs = []
        for t in range(k):
            d = t - pad_l
            vt = v if d == 0 else pltpu.roll(v, shift=(-d) % w, axis=1)
            slabs.append(vt[:, 128:128 + lt])
        stacked = jnp.concatenate(slabs, axis=0)              # (k*C_bp, Lt)
        acc = jnp.dot(w2s, stacked,
                      preferred_element_type=jnp.float32) + b2

        out_ref[bi, :c_in, :] = x_ref[bi].astype(out_ref.dtype)
        out_ref[bi, c_in:, :] = acc.astype(out_ref.dtype)


# ---------------------------------------------------------------------------
# Parameter folding / tiling heuristics / wrapper
# ---------------------------------------------------------------------------

def _fold_params(params, eps=1e-5):
    """Fold eval-mode BN1 into the 1x1 conv and pre-stack the k-tap weight.

    The bottleneck channel count is zero-padded to a multiple of 8 so the
    in-kernel sublane (channel) stacking of the k tap slabs stays 8-sublane
    aligned for f32 (padded channels are exact zeros and contribute nothing).
    """
    (w1, b1, g1, be1, m1, v1, w2, b2, g2, be2, m2, v2) = params
    s1 = g1 * jax.lax.rsqrt(v1 + eps)
    sh1 = be1 - m1 * s1
    w1f = w1 * s1[None, :]                         # (C_b, C_in)
    b1f = b1 + w1 @ sh1                            # (C_b,)
    s2v = g2 * jax.lax.rsqrt(v2 + eps)             # (C_b,)
    sh2v = be2 - m2 * s2v                          # (C_b,)

    c_b = w1f.shape[0]
    c_out, _, k = w2.shape
    c_bp = _round_up(c_b, 8)
    pad = c_bp - c_b
    if pad:
        w1f = jnp.pad(w1f, ((0, pad), (0, 0)))
        b1f = jnp.pad(b1f, ((0, pad),))
        s2v = jnp.pad(s2v, ((0, pad),))
        sh2v = jnp.pad(sh2v, ((0, pad),))
        w2 = jnp.pad(w2, ((0, 0), (0, pad), (0, 0)))

    # Tap-stacked weight: column block t is tap t's (C_out, C_bp) matrix, so
    # the whole k-tap conv is one (C_out, k*C_bp) x (k*C_bp, L) matmul.
    w2s = jnp.transpose(w2, (0, 2, 1)).reshape(c_out, k * c_bp)
    return (w1f, b1f[:, None], s2v[:, None], sh2v[:, None], w2s, b2[:, None])


def _pick_tiles(n, c_in, c_bp, c_out, k, seq, max_l_tile):
    """Pick (batch block NB, L tile, vmem_limit_bytes) for this device."""
    try:
        vmem_cap = int(pltpu.get_tpu_info().vmem_capacity_bytes)
    except Exception:
        vmem_cap = 64 * 1024 * 1024        # conservative (v7x per-core) floor
    budget = vmem_cap // 2                 # headroom for dbl-buffering/regalloc
    c_tot = c_in + c_out
    itemsize = 4                           # f32
    halo = 0 if seq < 128 else 256

    def step_bytes(nb, lt):
        io = nb * (c_in * (lt + halo) + c_tot * lt) * itemsize * 2   # 2x buffered
        tmp = nb * ((c_in + 3 * c_bp) * (lt + halo)
                    + (k * c_bp + c_out) * lt) * itemsize
        return io + tmp

    if seq < 128:
        lt = seq
    else:
        cap = min(max_l_tile, (seq // 128) * 128)
        lt = 128
        for cand in (2048, 1024, 512, 256, 128):
            cand = min(cand, cap)
            if step_bytes(1, cand) <= budget:
                lt = cand
                break

    nb = 1
    while (nb * 2 <= min(n, 8) and n % (nb * 2) == 0
           and step_bytes(nb * 2, lt) <= budget):
        nb *= 2

    vmem_limit = int(min(vmem_cap - vmem_cap // 8,
                         max(3 * step_bytes(nb, lt), 64 * 1024 * 1024)))
    return nb, lt, vmem_limit


def dense_layer1d(x, params, kernel_size, *, max_l_tile=2048):
    """x: (N, C_in, L) f32 -> (N, C_in + C_out, L).  Matches DenseLayer1D
    (eval-mode BatchNorm)."""
    n, c_in, seq = x.shape
    w1f, b1f, s2, sh2, w2s, b2r = _fold_params(params)
    c_bp = w1f.shape[0]
    c_out = w2s.shape[0]
    c_tot = c_in + c_out
    k = kernel_size
    pad_l = (k - 1) // 2
    pad_r = (k - 1) - pad_l
    assert k >= 1 and pad_l <= 128 and pad_r <= 128, \
        "kernel_size too large for the 128-lane halo"
    assert max_l_tile >= 128

    nb, l_tile, vmem_limit = _pick_tiles(n, c_in, c_bp, c_out, k, seq,
                                         max_l_tile)
    weights = (w1f, b1f, s2, sh2, w2s, b2r)

    if seq < 128:
        kern = functools.partial(dense_small_kernel, k=k, pad_l=pad_l, nb=nb)
        grid = (pl.cdiv(n, nb),)
        wspecs = [pl.BlockSpec(a.shape, lambda b, _nd=a.ndim: (0,) * _nd)
                  for a in weights]
        in_specs = [pl.BlockSpec((nb, c_in, seq), lambda b: (b, 0, 0))] + wspecs
        out_specs = pl.BlockSpec((nb, c_tot, seq), lambda b: (b, 0, 0))
        dims = ("parallel",)
        args = (x,) + weights
    else:
        lt128 = l_tile // 128
        n_lane_blocks = pl.cdiv(seq, 128)
        kern = functools.partial(dense_tiled_kernel, k=k, pad_l=pad_l,
                                 seq_len=seq, l_tile=l_tile, nb=nb)
        grid = (pl.cdiv(n, nb), pl.cdiv(seq, l_tile))
        wspecs = [pl.BlockSpec(a.shape, lambda b, j, _nd=a.ndim: (0,) * _nd)
                  for a in weights]
        in_specs = [
            # left halo (content fully masked for tile 0)
            pl.BlockSpec((nb, c_in, 128),
                         lambda b, j: (b, 0, jnp.maximum(j * lt128 - 1, 0))),
            # main tile
            pl.BlockSpec((nb, c_in, l_tile), lambda b, j: (b, 0, j)),
            # right halo (content fully masked past the sequence end)
            pl.BlockSpec((nb, c_in, 128),
                         lambda b, j: (b, 0, jnp.minimum((j + 1) * lt128,
                                                         n_lane_blocks - 1))),
        ] + wspecs
        out_specs = pl.BlockSpec((nb, c_tot, l_tile), lambda b, j: (b, 0, j))
        dims = ("parallel", "parallel")
        args = (x, x, x) + weights

    return pl.pallas_call(
        kern,
        out_shape=jax.ShapeDtypeStruct((n, c_tot, seq), x.dtype),
        grid=grid,
        in_specs=in_specs,
        out_specs=out_specs,
        compiler_params=pltpu.CompilerParams(
            dimension_semantics=dims, vmem_limit_bytes=vmem_limit),
    )(*args)


# ---------------------------------------------------------------------------
# Pure-JAX reference + demo
# ---------------------------------------------------------------------------

def reference_forward(x_ncl, params, kernel_size, eps=1e-5):
    """Pure-JAX reference matching PyTorch DenseLayer1D (eval-mode BN)."""
    (w1, b1, g1, be1, m1, v1, w2, b2, g2, be2, m2, v2) = params
    s1 = g1 / jnp.sqrt(v1 + eps)
    h = jnp.maximum(x_ncl, 0.0) * s1[None, :, None] + (be1 - m1 * s1)[None, :, None]
    h = jnp.einsum('oc,ncl->nol', w1, h) + b1[None, :, None]
    s2 = g2 / jnp.sqrt(v2 + eps)
    h = jnp.maximum(h, 0.0) * s2[None, :, None] + (be2 - m2 * s2)[None, :, None]
    k = kernel_size
    pad_l = (k - 1) // 2
    pad_r = (k - 1) - pad_l
    out = jax.lax.conv_general_dilated(
        h, w2, window_strides=(1,), padding=[(pad_l, pad_r)],
        dimension_numbers=('NCH', 'OIH', 'NCH')) + b2[None, :, None]
    return jnp.concatenate([x_ncl, out], axis=1)


def make_params(key, c_in, c_b, c_out, kernel_size):
    ks = jax.random.split(key, 12)
    w1 = jax.random.normal(ks[0], (c_b, c_in), jnp.float32) * 0.2
    b1 = jax.random.normal(ks[1], (c_b,), jnp.float32) * 0.1
    g1 = jax.random.normal(ks[2], (c_in,), jnp.float32) * 0.1 + 1.0
    be1 = jax.random.normal(ks[3], (c_in,), jnp.float32) * 0.1
    m1 = jax.random.normal(ks[4], (c_in,), jnp.float32) * 0.1
    v1 = jax.random.uniform(ks[5], (c_in,), jnp.float32, 0.5, 1.5)
    w2 = jax.random.normal(ks[6], (c_out, c_b, kernel_size), jnp.float32) * 0.2
    b2 = jax.random.normal(ks[7], (c_out,), jnp.float32) * 0.1
    g2 = jax.random.normal(ks[8], (c_b,), jnp.float32) * 0.1 + 1.0
    be2 = jax.random.normal(ks[9], (c_b,), jnp.float32) * 0.1
    m2 = jax.random.normal(ks[10], (c_b,), jnp.float32) * 0.1
    v2 = jax.random.uniform(ks[11], (c_b,), jnp.float32, 0.5, 1.5)
    return (w1, b1, g1, be1, m1, v1, w2, b2, g2, be2, m2, v2)


def _check(n, c_in, c_b, c_out, k, seq, key, max_l_tile=2048):
    k_x, k_p = jax.random.split(key)
    x = jax.random.normal(k_x, (n, c_in, seq), jnp.float32)
    params = make_params(k_p, c_in, c_b, c_out, k)
    fn = jax.jit(functools.partial(dense_layer1d, kernel_size=k,
                                   max_l_tile=max_l_tile))
    y = fn(x, params)
    jax.block_until_ready(y)
    y_ref = reference_forward(x, params, k)
    assert y.shape == (n, c_in + c_out, seq), y.shape
    err = float(jnp.max(jnp.abs(y - y_ref)))
    assert err < 2e-3, err


if __name__ == "__main__":
    key = jax.random.PRNGKey(0)
    keys = jax.random.split(key, 3)
    # Small-seq path (whole sequence per step, batch-blocked); the module-spec
    # demo shapes: batch=2, in=4, bottleneck=8, out=8, k=3, L=16.
    _check(n=2, c_in=4, c_b=8, c_out=8, k=3, seq=16, key=keys[0])
    # Tiled path: two L tiles with halos (tile forced to 128 lanes), odd C_b
    # (exercises the bottleneck-channel padding to a multiple of 8).
    _check(n=2, c_in=8, c_b=12, c_out=16, k=5, seq=256, key=keys[1],
           max_l_tile=128)
    # Tiled path with a partial last tile and an even kernel (asymmetric
    # 'same' padding), non-multiple-of-8 C_in.
    _check(n=3, c_in=5, c_b=8, c_out=8, k=4, seq=300, key=keys[2],
           max_l_tile=128)
    print("KERNEL_OK")
</pallas_src>

<mosaic_0001>
module attributes {stable_mosaic.version = 11 : i64} {
  func.func @dense_small_kernel(%arg0: i32, %arg1: memref<2x4x16xf32, #tpu.memory_space<vmem>>, %arg2: memref<8x4xf32, #tpu.memory_space<vmem>>, %arg3: memref<8x1xf32, #tpu.memory_space<vmem>>, %arg4: memref<8x1xf32, #tpu.memory_space<vmem>>, %arg5: memref<8x1xf32, #tpu.memory_space<vmem>>, %arg6: memref<8x24xf32, #tpu.memory_space<vmem>>, %arg7: memref<8x1xf32, #tpu.memory_space<vmem>>, %arg8: memref<2x12x16xf32, #tpu.memory_space<vmem>>) attributes {dimension_semantics = [#tpu.dimension_semantics<parallel>], iteration_bounds = array<i64: 1>, scalar_prefetch = 0 : i64, scratch_operands = 0 : i64, tpu.core_type = #tpu.core_type<tc>, window_params = [{transform_indices = @transform_0, window_bounds = array<i64: 2, 4, 16>}, {pipeline_mode = #tpu.pipeline_mode<synchronous>, transform_indices = @transform_1, window_bounds = array<i64: 8, 4>}, {pipeline_mode = #tpu.pipeline_mode<synchronous>, transform_indices = @transform_2, window_bounds = array<i64: 8, 1>}, {pipeline_mode = #tpu.pipeline_mode<synchronous>, transform_indices = @transform_3, window_bounds = array<i64: 8, 1>}, {pipeline_mode = #tpu.pipeline_mode<synchronous>, transform_indices = @transform_4, window_bounds = array<i64: 8, 1>}, {pipeline_mode = #tpu.pipeline_mode<synchronous>, transform_indices = @transform_5, window_bounds = array<i64: 8, 24>}, {pipeline_mode = #tpu.pipeline_mode<synchronous>, transform_indices = @transform_6, window_bounds = array<i64: 8, 1>}, {transform_indices = @transform_7, window_bounds = array<i64: 2, 12, 16>}]} {
    %c0 = arith.constant 0 : index
    %c0_0 = arith.constant 0 : index
    %0 = vector.load %arg2[%c0, %c0_0] : memref<8x4xf32, #tpu.memory_space<vmem>>, vector<8x4xf32>
    %c0_1 = arith.constant 0 : index
    %c0_2 = arith.constant 0 : index
    %1 = vector.load %arg3[%c0_1, %c0_2] : memref<8x1xf32, #tpu.memory_space<vmem>>, vector<8x1xf32>
    %c0_3 = arith.constant 0 : index
    %c0_4 = arith.constant 0 : index
    %2 = vector.load %arg4[%c0_3, %c0_4] : memref<8x1xf32, #tpu.memory_space<vmem>>, vector<8x1xf32>
    %c0_5 = arith.constant 0 : index
    %c0_6 = arith.constant 0 : index
    %3 = vector.load %arg5[%c0_5, %c0_6] : memref<8x1xf32, #tpu.memory_space<vmem>>, vector<8x1xf32>
    %c0_7 = arith.constant 0 : index
    %c0_8 = arith.constant 0 : index
    %4 = vector.load %arg6[%c0_7, %c0_8] : memref<8x24xf32, #tpu.memory_space<vmem>>, vector<8x24xf32>
    %c0_9 = arith.constant 0 : index
    %c0_10 = arith.constant 0 : index
    %5 = vector.load %arg7[%c0_9, %c0_10] : memref<8x1xf32, #tpu.memory_space<vmem>>, vector<8x1xf32>
    %6 = tpu.iota {dimensions = array<i32: 0>} : vector<16x16xi32>
    %7 = tpu.iota {dimensions = array<i32: 1>} : vector<16x16xi32>
    %c-1_i32 = arith.constant -1 : i32
    %8 = vector.broadcast %c-1_i32 : i32 to vector<16x16xi32>
    %9 = arith.addi %7, %8 : vector<16x16xi32>
    %10 = arith.cmpi eq, %6, %9 : vector<16x16xi32>
    %11 = arith.extui %10 : vector<16x16xi1> to vector<16x16xi32>
    %12 = arith.sitofp %11 : vector<16x16xi32> to vector<16x16xf32>
    %c1_i32 = arith.constant 1 : i32
    %13 = vector.broadcast %c1_i32 : i32 to vector<16x16xi32>
    %14 = arith.addi %7, %13 : vector<16x16xi32>
    %15 = arith.cmpi eq, %6, %14 : vector<16x16xi32>
    %16 = arith.extui %15 : vector<16x16xi1> to vector<16x16xi32>
    %17 = arith.sitofp %16 : vector<16x16xi32> to vector<16x16xf32>
    %c0_11 = arith.constant 0 : index
    %c0_12 = arith.constant 0 : index
    %c0_13 = arith.constant 0 : index
    %18 = vector.load %arg1[%c0_11, %c0_12, %c0_13] : memref<2x4x16xf32, #tpu.memory_space<vmem>>, vector<1x4x16xf32>
    %19 = vector.shape_cast %18 : vector<1x4x16xf32> to vector<4x16xf32>
    %cst = arith.constant 0.000000e+00 : f32
    %20 = vector.broadcast %cst : f32 to vector<4x16xf32>
    %21 = arith.maximumf %19, %20 : vector<4x16xf32>
    %cst_14 = arith.constant dense<0.000000e+00> : vector<8x16xf32>
    %22 = tpu.matmul %0, %21, %cst_14 {dimension_numbers = #tpu.dot_dimension_numbers<[1], [0], [0], [1], [0, 0, 1, 1], [], []>} : vector<8x4xf32>, vector<4x16xf32>, vector<8x16xf32> -> vector<8x16xf32>
    %23 = vector.broadcast %1 : vector<8x1xf32> to vector<8x16xf32>
    %24 = arith.addf %22, %23 : vector<8x16xf32>
    %cst_15 = arith.constant 0.000000e+00 : f32
    %25 = vector.broadcast %cst_15 : f32 to vector<8x16xf32>
    %26 = arith.maximumf %24, %25 : vector<8x16xf32>
    %27 = vector.broadcast %2 : vector<8x1xf32> to vector<8x16xf32>
    %28 = arith.mulf %26, %27 : vector<8x16xf32>
    %29 = vector.broadcast %3 : vector<8x1xf32> to vector<8x16xf32>
    %30 = arith.addf %28, %29 : vector<8x16xf32>
    %cst_16 = arith.constant dense<0.000000e+00> : vector<8x16xf32>
    %31 = tpu.matmul %30, %12, %cst_16 {dimension_numbers = #tpu.dot_dimension_numbers<[1], [0], [0], [1], [0, 0, 1, 1], [], []>} : vector<8x16xf32>, vector<16x16xf32>, vector<8x16xf32> -> vector<8x16xf32>
    %cst_17 = arith.constant dense<0.000000e+00> : vector<8x16xf32>
    %32 = tpu.matmul %30, %17, %cst_17 {dimension_numbers = #tpu.dot_dimension_numbers<[1], [0], [0], [1], [0, 0, 1, 1], [], []>} : vector<8x16xf32>, vector<16x16xf32>, vector<8x16xf32> -> vector<8x16xf32>
    %33 = tpu.concatenate %31, %30, %32 in 0 : vector<8x16xf32>, vector<8x16xf32>, vector<8x16xf32> -> vector<24x16xf32>
    %cst_18 = arith.constant dense<0.000000e+00> : vector<8x16xf32>
    %34 = tpu.matmul %4, %33, %cst_18 {dimension_numbers = #tpu.dot_dimension_numbers<[1], [0], [0], [1], [0, 0, 1, 1], [], []>} : vector<8x24xf32>, vector<24x16xf32>, vector<8x16xf32> -> vector<8x16xf32>
    %35 = vector.broadcast %5 : vector<8x1xf32> to vector<8x16xf32>
    %36 = arith.addf %34, %35 : vector<8x16xf32>
    %c0_19 = arith.constant 0 : index
    %c0_20 = arith.constant 0 : index
    %c0_21 = arith.constant 0 : index
    %37 = vector.load %arg8[%c0_19, %c0_20, %c0_21] : memref<2x12x16xf32, #tpu.memory_space<vmem>>, vector<1x4x16xf32>
    %38 = vector.shape_cast %37 : vector<1x4x16xf32> to vector<4x16xf32>
    %39 = vector.shape_cast %19 : vector<4x16xf32> to vector<1x4x16xf32>
    tpu.vector_store %arg8[%c0_19, %c0_20, %c0_21], %39 {strides = array<i32>} : memref<2x12x16xf32, #tpu.memory_space<vmem>>, vector<1x4x16xf32>,
    %c0_22 = arith.constant 0 : index
    %c4 = arith.constant 4 : index
    %c0_23 = arith.constant 0 : index
    %40 = vector.load %arg8[%c0_22, %c4, %c0_23] : memref<2x12x16xf32, #tpu.memory_space<vmem>>, vector<1x8x16xf32>
    %41 = vector.shape_cast %40 : vector<1x8x16xf32> to vector<8x16xf32>
    %42 = vector.shape_cast %36 : vector<8x16xf32> to vector<1x8x16xf32>
    tpu.vector_store %arg8[%c0_22, %c4, %c0_23], %42 {strides = array<i32>} : memref<2x12x16xf32, #tpu.memory_space<vmem>>, vector<1x8x16xf32>,
    %c1 = arith.constant 1 : index
    %c0_24 = arith.constant 0 : index
    %c0_25 = arith.constant 0 : index
    %43 = vector.load %arg1[%c1, %c0_24, %c0_25] : memref<2x4x16xf32, #tpu.memory_space<vmem>>, vector<1x4x16xf32>
    %44 = vector.shape_cast %43 : vector<1x4x16xf32> to vector<4x16xf32>
    %cst_26 = arith.constant 0.000000e+00 : f32
    %45 = vector.broadcast %cst_26 : f32 to vector<4x16xf32>
    %46 = arith.maximumf %44, %45 : vector<4x16xf32>
    %cst_27 = arith.constant dense<0.000000e+00> : vector<8x16xf32>
    %47 = tpu.matmul %0, %46, %cst_27 {dimension_numbers = #tpu.dot_dimension_numbers<[1], [0], [0], [1], [0, 0, 1, 1], [], []>} : vector<8x4xf32>, vector<4x16xf32>, vector<8x16xf32> -> vector<8x16xf32>
    %48 = vector.broadcast %1 : vector<8x1xf32> to vector<8x16xf32>
    %49 = arith.addf %47, %48 : vector<8x16xf32>
    %cst_28 = arith.constant 0.000000e+00 : f32
    %50 = vector.broadcast %cst_28 : f32 to vector<8x16xf32>
    %51 = arith.maximumf %49, %50 : vector<8x16xf32>
    %52 = vector.broadcast %2 : vector<8x1xf32> to vector<8x16xf32>
    %53 = arith.mulf %51, %52 : vector<8x16xf32>
    %54 = vector.broadcast %3 : vector<8x1xf32> to vector<8x16xf32>
    %55 = arith.addf %53, %54 : vector<8x16xf32>
    %cst_29 = arith.constant dense<0.000000e+00> : vector<8x16xf32>
    %56 = tpu.matmul %55, %12, %cst_29 {dimension_numbers = #tpu.dot_dimension_numbers<[1], [0], [0], [1], [0, 0, 1, 1], [], []>} : vector<8x16xf32>, vector<16x16xf32>, vector<8x16xf32> -> vector<8x16xf32>
    %cst_30 = arith.constant dense<0.000000e+00> : vector<8x16xf32>
    %57 = tpu.matmul %55, %17, %cst_30 {dimension_numbers = #tpu.dot_dimension_numbers<[1], [0], [0], [1], [0, 0, 1, 1], [], []>} : vector<8x16xf32>, vector<16x16xf32>, vector<8x16xf32> -> vector<8x16xf32>
    %58 = tpu.concatenate %56, %55, %57 in 0 : vector<8x16xf32>, vector<8x16xf32>, vector<8x16xf32> -> vector<24x16xf32>
    %cst_31 = arith.constant dense<0.000000e+00> : vector<8x16xf32>
    %59 = tpu.matmul %4, %58, %cst_31 {dimension_numbers = #tpu.dot_dimension_numbers<[1], [0], [0], [1], [0, 0, 1, 1], [], []>} : vector<8x24xf32>, vector<24x16xf32>, vector<8x16xf32> -> vector<8x16xf32>
    %60 = vector.broadcast %5 : vector<8x1xf32> to vector<8x16xf32>
    %61 = arith.addf %59, %60 : vector<8x16xf32>
    %c1_32 = arith.constant 1 : index
    %c0_33 = arith.constant 0 : index
    %c0_34 = arith.constant 0 : index
    %62 = vector.load %arg8[%c1_32, %c0_33, %c0_34] : memref<2x12x16xf32, #tpu.memory_space<vmem>>, vector<1x4x16xf32>
    %63 = vector.shape_cast %62 : vector<1x4x16xf32> to vector<4x16xf32>
    %64 = vector.shape_cast %44 : vector<4x16xf32> to vector<1x4x16xf32>
    tpu.vector_store %arg8[%c1_32, %c0_33, %c0_34], %64 {strides = array<i32>} : memref<2x12x16xf32, #tpu.memory_space<vmem>>, vector<1x4x16xf32>,
    %c1_35 = arith.constant 1 : index
    %c4_36 = arith.constant 4 : index
    %c0_37 = arith.constant 0 : index
    %65 = vector.load %arg8[%c1_35, %c4_36, %c0_37] : memref<2x12x16xf32, #tpu.memory_space<vmem>>, vector<1x8x16xf32>
    %66 = vector.shape_cast %65 : vector<1x8x16xf32> to vector<8x16xf32>
    %67 = vector.shape_cast %61 : vector<8x16xf32> to vector<1x8x16xf32>
    tpu.vector_store %arg8[%c1_35, %c4_36, %c0_37], %67 {strides = array<i32>} : memref<2x12x16xf32, #tpu.memory_space<vmem>>, vector<1x8x16xf32>,
    return
  }
  func.func @transform_0(%arg0: i32) -> (i32, i32, i32) {
    %c0_i32 = arith.constant 0 : i32
    %c0_i32_0 = arith.constant 0 : i32
    %c0_i32_1 = arith.constant 0 : i32
    return %arg0, %c0_i32, %c0_i32_0 : i32, i32, i32
  }
  func.func @transform_1(%arg0: i32) -> (i32, i32) {
    %c0_i32 = arith.constant 0 : i32
    %c0_i32_0 = arith.constant 0 : i32
    %c0_i32_1 = arith.constant 0 : i32
    return %c0_i32, %c0_i32_0 : i32, i32
  }
  func.func @transform_2(%arg0: i32) -> (i32, i32) {
    %c0_i32 = arith.constant 0 : i32
    %c0_i32_0 = arith.constant 0 : i32
    %c0_i32_1 = arith.constant 0 : i32
    return %c0_i32, %c0_i32_0 : i32, i32
  }
  func.func @transform_3(%arg0: i32) -> (i32, i32) {
    %c0_i32 = arith.constant 0 : i32
    %c0_i32_0 = arith.constant 0 : i32
    %c0_i32_1 = arith.constant 0 : i32
    return %c0_i32, %c0_i32_0 : i32, i32
  }
  func.func @transform_4(%arg0: i32) -> (i32, i32) {
    %c0_i32 = arith.constant 0 : i32
    %c0_i32_0 = arith.constant 0 : i32
    %c0_i32_1 = arith.constant 0 : i32
    return %c0_i32, %c0_i32_0 : i32, i32
  }
  func.func @transform_5(%arg0: i32) -> (i32, i32) {
    %c0_i32 = arith.constant 0 : i32
    %c0_i32_0 = arith.constant 0 : i32
    %c0_i32_1 = arith.constant 0 : i32
    return %c0_i32, %c0_i32_0 : i32, i32
  }
  func.func @transform_6(%arg0: i32) -> (i32, i32) {
    %c0_i32 = arith.constant 0 : i32
    %c0_i32_0 = arith.constant 0 : i32
    %c0_i32_1 = arith.constant 0 : i32
    return %c0_i32, %c0_i32_0 : i32, i32
  }
  func.func @transform_7(%arg0: i32) -> (i32, i32, i32) {
    %c0_i32 = arith.constant 0 : i32
    %c0_i32_0 = arith.constant 0 : i32
    %c0_i32_1 = arith.constant 0 : i32
    return %arg0, %c0_i32, %c0_i32_0 : i32, i32, i32
  }
}

</mosaic_0001>

<llo_original>
// kernel: dense_layer1d.1
$region0: #{dense_layer1d.1}
  #allocation0 [shape = 'u32[]', space=smem, size = 0x4, offset = 0x4, fixed_abs, tag = 'smem constant byte address 0x4 - core index']
  #allocation1 [shape = 'u32[144,128]{1,0:T(1,128)}', space=vmem, size = 0x12000, scoped, tag = 'internal scratch']
  %s0 = inlined_call_operand.vmem [shape: f32[2,4,16], index: 0, kind: input, shape index: {}]
  %s1 = inlined_call_operand.vmem [shape: f32[8,4], index: 1, kind: input, shape index: {}]
  %s2 = inlined_call_operand.vmem [shape: f32[8,1], index: 2, kind: input, shape index: {}]
  %s3 = inlined_call_operand.vmem [shape: f32[8,1], index: 3, kind: input, shape index: {}]
  %s4 = inlined_call_operand.vmem [shape: f32[8,1], index: 4, kind: input, shape index: {}]
  %s5 = inlined_call_operand.vmem [shape: f32[8,24], index: 5, kind: input, shape index: {}]
  %s6 = inlined_call_operand.vmem [shape: f32[8,1], index: 6, kind: input, shape index: {}]
  %s7 = inlined_call_operand.vmem [shape: f32[2,12,16], index: 7, kind: output, shape index: {}]
  %s8 = sld [smem:[#allocation0]]
  $region38: #{dense_layer1d.1} parent=0
    _
  %s10 = ssub.s32 1, %s8
  %s11 = scalar_select 0, %s10, %s8
  // Predicated region
  $region2: #{dense_layer1d.1} parent=0 // pred_check
    _
  $region3: #{dense_layer1d.1} parent=0 // pred_check_branch
    %13 = sbr.rel (0) target = $region5
  $region4: #{dense_layer1d.1} parent=0 // pred_region
    _
  $region5: #{dense_layer1d.1} parent=0 // pred_fallthru
    _
  // Predicated region
  $region6: #{dense_layer1d.1} parent=0 // pred_check
    _
  $region7: #{dense_layer1d.1} parent=0 // pred_check_branch
    %15 = sbr.rel (0) target = $region9
  $region8: #{dense_layer1d.1} parent=0 // pred_region
    _
  $region9: #{dense_layer1d.1} parent=0 // pred_fallthru
    _
  // Predicated region
  $region10: #{dense_layer1d.1} parent=0 // pred_check
    _
  $region11: #{dense_layer1d.1} parent=0 // pred_check_branch
    %17 = sbr.rel (0) target = $region13
  $region12: #{dense_layer1d.1} parent=0 // pred_region
    _
  $region13: #{dense_layer1d.1} parent=0 // pred_fallthru
    _
  // Predicated region
  $region14: #{dense_layer1d.1} parent=0 // pred_check
    _
  $region15: #{dense_layer1d.1} parent=0 // pred_check_branch
    %19 = sbr.rel (0) target = $region17
  $region16: #{dense_layer1d.1} parent=0 // pred_region
    _
  $region17: #{dense_layer1d.1} parent=0 // pred_fallthru
    _
  // Predicated region
  $region18: #{dense_layer1d.1} parent=0 // pred_check
    _
  $region19: #{dense_layer1d.1} parent=0 // pred_check_branch
    %21 = sbr.rel (0) target = $region21
  $region20: #{dense_layer1d.1} parent=0 // pred_region
    _
  $region21: #{dense_layer1d.1} parent=0 // pred_fallthru
    _
  // Predicated region
  $region22: #{dense_layer1d.1} parent=0 // pred_check
    _
  $region23: #{dense_layer1d.1} parent=0 // pred_check_branch
    %23 = sbr.rel (0) target = $region25
  $region24: #{dense_layer1d.1} parent=0 // pred_region
    _
  $region25: #{dense_layer1d.1} parent=0 // pred_fallthru
    _
  // Predicated region
  $region26: #{dense_layer1d.1} parent=0 // pred_check
    _
  $region27: #{dense_layer1d.1} parent=0 // pred_check_branch
    %25 = sbr.rel (0) target = $region29
  $region28: #{dense_layer1d.1} parent=0 // pred_region
    _
  $region29: #{dense_layer1d.1} parent=0 // pred_fallthru
    _
  %v26 = vld [vmem:[%s1] sm:$0xff]
  %v27 = vld [vmem:[%s2] sm:$0xff]
  %v28 = vld [vmem:[%s3] sm:$0xff]
  %v29 = vld [vmem:[%s4] sm:$0xff]
  %v30 = vld [vmem:[%s5] sm:$0xff]
  %v31 = vld [vmem:[%s6] sm:$0xff]
  %v32 = vlaneseq
  %v33 = vshrl.u32 %v32, 7
  %v34 = vadd.s32 %v33, 8
  %v35 = vlaneseq
  %v36 = vand.u32 %v35, 127
  %v37 = vadd.s32 %v36, 4294967295
  %vm38 = vcmp.eq.s32.totalorder %v33, %v37
  %vm39 = vcmp.eq.s32.totalorder %v34, %v37
  %v40 = vsel %vm38, 1, 0
  %v41 = vsel %vm39, 1, 0
  %v42 = vcvt.s32.f32 %v40
  %v43 = vcvt.s32.f32 %v41
  %v44 = vadd.s32 %v36, 1
  %vm45 = vcmp.eq.s32.totalorder %v33, %v44
  %vm46 = vcmp.eq.s32.totalorder %v34, %v44
  %v47 = vsel %vm45, 1, 0
  %v48 = vsel %vm46, 1, 0
  %v49 = vcvt.s32.f32 %v47
  %v50 = vcvt.s32.f32 %v48
  %v51 = vld [vmem:[%s0] sm:$0xf]
  %v52 = vmax.f32 %v51, 0.0
  %54 = vset.pattern.permute.xlu0 0
  %55 = vperm.xlu0 %54, %v27
  %v56 = vpop.permute.xlu0 %55
  %vm58 = vcmask 31744
  %v60 = vsel %vm58, %v26, 0
  %vm62 = vcmask 1043456
  %v64 = vsel %vm62, %v52, 0
  %66 = vmatprep.subr.mxu0 0.0
  %67 = vmatpush1.msra.mxu0 %v64
  %68 = vmatprep.subr.mxu0 0.0
  %69 = vmatpush1.msra.mxu0 0.0
  %70 = vmatprep.subr.mxu0 0.0
  %71 = vmatpush1.msra.mxu0 0.0
  %72 = vmatprep.subr.mxu0 0.0
  %73 = vmatpush1.msra.mxu0 0.0
  %74 = vmatprep.subr.mxu0 0.0
  %75 = vmatpush1.msra.mxu0 0.0
  %76 = vmatprep.subr.mxu0 0.0
  %77 = vmatpush1.msra.mxu0 0.0
  %78 = vmatprep.subr.mxu0 0.0
  %79 = vmatpush1.msra.mxu0 0.0
  %80 = vmatprep.subr.mxu0 0.0
  %81 = vmatpush1.msra.mxu0 0.0
  %82 = vmatprep.subr.mxu0 0.0
  %83 = vmatpush1.msra.mxu0 0.0
  %84 = vmatprep.subr.mxu0 0.0
  %85 = vmatpush1.msra.mxu0 0.0
  %86 = vmatprep.subr.mxu0 0.0
  %87 = vmatpush1.msra.mxu0 0.0
  %88 = vmatprep.subr.mxu0 0.0
  %89 = vmatpush1.msra.mxu0 0.0
  %90 = vmatprep.subr.mxu0 0.0
  %91 = vmatpush1.msra.mxu0 0.0
  %92 = vmatprep.subr.mxu0 0.0
  %93 = vmatpush1.msra.mxu0 0.0
  %94 = vmatprep.subr.mxu0 0.0
  %95 = vmatpush1.msra.mxu0 0.0
  %96 = vmatprep.subr.mxu0 0.0
  %97 = vmatpush1.msra.mxu0 0.0
  %98 = vmatprep.subr.mxu0 0.0
  %99 = vmatpush1.msra.mxu0 0.0
  %100 = vmatprep.subr.mxu0 0.0
  %101 = vmatpush1.msra.mxu0 0.0
  %102 = vmatprep.subr.mxu0 0.0
  %103 = vmatpush1.msra.mxu0 0.0
  %104 = vmatprep.subr.mxu0 0.0
  %105 = vmatpush1.msra.mxu0 0.0
  %106 = vmatprep.subr.mxu0 0.0
  %107 = vmatpush1.msra.mxu0 0.0
  %108 = vmatprep.subr.mxu0 0.0
  %109 = vmatpush1.msra.mxu0 0.0
  %110 = vmatprep.subr.mxu0 0.0
  %111 = vmatpush1.msra.mxu0 0.0
  %112 = vmatprep.subr.mxu0 0.0
  %113 = vmatpush1.msra.mxu0 0.0
  %114 = vmatprep.subr.mxu0 0.0
  %115 = vmatpush1.msra.mxu0 0.0
  %116 = vmatprep.subr.mxu0 0.0
  %117 = vmatpush1.msra.mxu0 0.0
  %118 = vmatprep.subr.mxu0 0.0
  %119 = vmatpush1.msra.mxu0 0.0
  %120 = vmatprep.subr.mxu0 0.0
  %121 = vmatpush1.msra.mxu0 0.0
  %122 = vmatprep.subr.mxu0 0.0
  %123 = vmatpush1.msra.mxu0 0.0
  %124 = vmatprep.subr.mxu0 0.0
  %125 = vmatpush1.msra.mxu0 0.0
  %126 = vmatprep.subr.mxu0 0.0
  %127 = vmatpush1.msra.mxu0 0.0
  %128 = vmatprep.subr.mxu0 0.0
  %129 = vmatpush1.msra.mxu0 0.0
  %130 = vmatprep.mubr.f32.mxu0 0.0
  %131 = vmatmul.mubr.f32.gmra.mrb[0].mxu0 %v60
  %v132 = vpop.f32.mrb[0].mxu0
  %v133 = vadd.f32 %v56, %v132
  %v134 = vpop.f32.mrb[0].mxu0
  %135 = vdwg.mxu0
  %v136 = vmax.f32 %v133, 0.0
  %138 = vset.pattern.permute.xlu0 0
  %139 = vperm.xlu0 %138, %v28
  %v140 = vpop.permute.xlu0 %139
  %v142 = vmul.f32 %v136, %v140
  %144 = vset.pattern.permute.xlu0 0
  %145 = vperm.xlu0 %144, %v29
  %v146 = vpop.permute.xlu0 %145
  %v148 = vadd.f32 %v142, %v146
  %vm149 = vcmask 130048
  %v151 = vsel %vm149, %v148, 0
  %153 = vmatprep.subr.mxu0 0.0
  %154 = vmatpush1.msra.mxu0 %v42
  %155 = vmatprep.subr.mxu0 0.0
  %156 = vmatpush1.msra.mxu0 %v43
  %157 = vmatprep.subr.mxu0 0.0
  %158 = vmatpush1.msra.mxu0 0.0
  %159 = vmatprep.subr.mxu0 0.0
  %160 = vmatpush1.msra.mxu0 0.0
  %161 = vmatprep.subr.mxu0 0.0
  %162 = vmatpush1.msra.mxu0 0.0
  %163 = vmatprep.subr.mxu0 0.0
  %164 = vmatpush1.msra.mxu0 0.0
  %165 = vmatprep.subr.mxu0 0.0
  %166 = vmatpush1.msra.mxu0 0.0
  %167 = vmatprep.subr.mxu0 0.0
  %168 = vmatpush1.msra.mxu0 0.0
  %169 = vmatprep.subr.mxu0 0.0
  %170 = vmatpush1.msra.mxu0 0.0
  %171 = vmatprep.subr.mxu0 0.0
  %172 = vmatpush1.msra.mxu0 0.0
  %173 = vmatprep.subr.mxu0 0.0
  %174 = vmatpush1.msra.mxu0 0.0
  %175 = vmatprep.subr.mxu0 0.0
  %176 = vmatpush1.msra.mxu0 0.0
  %177 = vmatprep.subr.mxu0 0.0
  %178 = vmatpush1.msra.mxu0 0.0
  %179 = vmatprep.subr.mxu0 0.0
  %180 = vmatpush1.msra.mxu0 0.0
  %181 = vmatprep.subr.mxu0 0.0
  %182 = vmatpush1.msra.mxu0 0.0
  %183 = vmatprep.subr.mxu0 0.0
  %184 = vmatpush1.msra.mxu0 0.0
  %185 = vmatprep.subr.mxu0 0.0
  %186 = vmatpush1.msra.mxu0 0.0
  %187 = vmatprep.subr.mxu0 0.0
  %188 = vmatpush1.msra.mxu0 0.0
  %189 = vmatprep.subr.mxu0 0.0
  %190 = vmatpush1.msra.mxu0 0.0
  %191 = vmatprep.subr.mxu0 0.0
  %192 = vmatpush1.msra.mxu0 0.0
  %193 = vmatprep.subr.mxu0 0.0
  %194 = vmatpush1.msra.mxu0 0.0
  %195 = vmatprep.subr.mxu0 0.0
  %196 = vmatpush1.msra.mxu0 0.0
  %197 = vmatprep.subr.mxu0 0.0
  %198 = vmatpush1.msra.mxu0 0.0
  %199 = vmatprep.subr.mxu0 0.0
  %200 = vmatpush1.msra.mxu0 0.0
  %201 = vmatprep.subr.mxu0 0.0
  %202 = vmatpush1.msra.mxu0 0.0
  %203 = vmatprep.subr.mxu0 0.0
  %204 = vmatpush1.msra.mxu0 0.0
  %205 = vmatprep.subr.mxu0 0.0
  %206 = vmatpush1.msra.mxu0 0.0
  %207 = vmatprep.subr.mxu0 0.0
  %208 = vmatpush1.msra.mxu0 0.0
  %209 = vmatprep.subr.mxu0 0.0
  %210 = vmatpush1.msra.mxu0 0.0
  %211 = vmatprep.subr.mxu0 0.0
  %212 = vmatpush1.msra.mxu0 0.0
  %213 = vmatprep.subr.mxu0 0.0
  %214 = vmatpush1.msra.mxu0 0.0
  %215 = vmatprep.subr.mxu0 0.0
  %216 = vmatpush1.msra.mxu0 0.0
  %217 = vmatprep.mubr.f32.mxu0 0.0
  %218 = vmatmul.mubr.f32.gmra.mrb[0].mxu0 %v151
  %v219 = vpop.f32.mrb[0].mxu0
  %v220 = vadd.f32 0.0, %v219
  %v221 = vpop.f32.mrb[0].mxu0
  %222 = vdwg.mxu0
  %223 = vmatprep.subr.mxu0 0.0
  %224 = vmatpush1.msra.mxu0 %v49
  %225 = vmatprep.subr.mxu0 0.0
  %226 = vmatpush1.msra.mxu0 %v50
  %227 = vmatprep.subr.mxu0 0.0
  %228 = vmatpush1.msra.mxu0 0.0
  %229 = vmatprep.subr.mxu0 0.0
  %230 = vmatpush1.msra.mxu0 0.0
  %231 = vmatprep.subr.mxu0 0.0
  %232 = vmatpush1.msra.mxu0 0.0
  %233 = vmatprep.subr.mxu0 0.0
  %234 = vmatpush1.msra.mxu0 0.0
  %235 = vmatprep.subr.mxu0 0.0
  %236 = vmatpush1.msra.mxu0 0.0
  %237 = vmatprep.subr.mxu0 0.0
  %238 = vmatpush1.msra.mxu0 0.0
  %239 = vmatprep.subr.mxu0 0.0
  %240 = vmatpush1.msra.mxu0 0.0
  %241 = vmatprep.subr.mxu0 0.0
  %242 = vmatpush1.msra.mxu0 0.0
  %243 = vmatprep.subr.mxu0 0.0
  %244 = vmatpush1.msra.mxu0 0.0
  %245 = vmatprep.subr.mxu0 0.0
  %246 = vmatpush1.msra.mxu0 0.0
  %247 = vmatprep.subr.mxu0 0.0
  %248 = vmatpush1.msra.mxu0 0.0
  %249 = vmatprep.subr.mxu0 0.0
  %250 = vmatpush1.msra.mxu0 0.0
  %251 = vmatprep.subr.mxu0 0.0
  %252 = vmatpush1.msra.mxu0 0.0
  %253 = vmatprep.subr.mxu0 0.0
  %254 = vmatpush1.msra.mxu0 0.0
  %255 = vmatprep.subr.mxu0 0.0
  %256 = vmatpush1.msra.mxu0 0.0
  %257 = vmatprep.subr.mxu0 0.0
  %258 = vmatpush1.msra.mxu0 0.0
  %259 = vmatprep.subr.mxu0 0.0
  %260 = vmatpush1.msra.mxu0 0.0
  %261 = vmatprep.subr.mxu0 0.0
  %262 = vmatpush1.msra.mxu0 0.0
  %263 = vmatprep.subr.mxu0 0.0
  %264 = vmatpush1.msra.mxu0 0.0
  %265 = vmatprep.subr.mxu0 0.0
  %266 = vmatpush1.msra.mxu0 0.0
  %267 = vmatprep.subr.mxu0 0.0
  %268 = vmatpush1.msra.mxu0 0.0
  %269 = vmatprep.subr.mxu0 0.0
  %270 = vmatpush1.msra.mxu0 0.0
  %271 = vmatprep.subr.mxu0 0.0
  %272 = vmatpush1.msra.mxu0 0.0
  %273 = vmatprep.subr.mxu0 0.0
  %274 = vmatpush1.msra.mxu0 0.0
  %275 = vmatprep.subr.mxu0 0.0
  %276 = vmatpush1.msra.mxu0 0.0
  %277 = vmatprep.subr.mxu0 0.0
  %278 = vmatpush1.msra.mxu0 0.0
  %279 = vmatprep.subr.mxu0 0.0
  %280 = vmatpush1.msra.mxu0 0.0
  %281 = vmatprep.subr.mxu0 0.0
  %282 = vmatpush1.msra.mxu0 0.0
  %283 = vmatprep.subr.mxu0 0.0
  %284 = vmatpush1.msra.mxu0 0.0
  %285 = vmatprep.subr.mxu0 0.0
  %286 = vmatpush1.msra.mxu0 0.0
  %287 = vmatprep.mubr.f32.mxu0 0.0
  %288 = vmatmul.mubr.f32.gmra.mrb[0].mxu0 %v151
  %v289 = vpop.f32.mrb[0].mxu0
  %v290 = vadd.f32 0.0, %v289
  %v291 = vpop.f32.mrb[0].mxu0
  %292 = vdwg.mxu0
  %294 = vset.pattern.permute.xlu0 0
  %295 = vperm.xlu0 %294, %v31
  %v296 = vpop.permute.xlu0 %295
  %vm298 = vcmask 195584
  %v300 = vsel %vm298, %v30, 0
  %302 = vmatprep.subr.mxu0 0.0
  %303 = vmatpush1.msra.mxu0 %v220
  %304 = vmatprep.subr.mxu0 0.0
  %305 = vmatpush1.msra.mxu0 %v148
  %306 = vmatprep.subr.mxu0 0.0
  %307 = vmatpush1.msra.mxu0 %v290
  %308 = vmatprep.subr.mxu0 0.0
  %309 = vmatpush1.msra.mxu0 0.0
  %310 = vmatprep.subr.mxu0 0.0
  %311 = vmatpush1.msra.mxu0 0.0
  %312 = vmatprep.subr.mxu0 0.0
  %313 = vmatpush1.msra.mxu0 0.0
  %314 = vmatprep.subr.mxu0 0.0
  %315 = vmatpush1.msra.mxu0 0.0
  %316 = vmatprep.subr.mxu0 0.0
  %317 = vmatpush1.msra.mxu0 0.0
  %318 = vmatprep.subr.mxu0 0.0
  %319 = vmatpush1.msra.mxu0 0.0
  %320 = vmatprep.subr.mxu0 0.0
  %321 = vmatpush1.msra.mxu0 0.0
  %322 = vmatprep.subr.mxu0 0.0
  %323 = vmatpush1.msra.mxu0 0.0
  %324 = vmatprep.subr.mxu0 0.0
  %325 = vmatpush1.msra.mxu0 0.0
  %326 = vmatprep.subr.mxu0 0.0
  %327 = vmatpush1.msra.mxu0 0.0
  %328 = vmatprep.subr.mxu0 0.0
  %329 = vmatpush1.msra.mxu0 0.0
  %330 = vmatprep.subr.mxu0 0.0
  %331 = vmatpush1.msra.mxu0 0.0
  %332 = vmatprep.subr.mxu0 0.0
  %333 = vmatpush1.msra.mxu0 0.0
  %334 = vmatprep.subr.mxu0 0.0
  %335 = vmatpush1.msra.mxu0 0.0
  %336 = vmatprep.subr.mxu0 0.0
  %337 = vmatpush1.msra.mxu0 0.0
  %338 = vmatprep.subr.mxu0 0.0
  %339 = vmatpush1.msra.mxu0 0.0
  %340 = vmatprep.subr.mxu0 0.0
  %341 = vmatpush1.msra.mxu0 0.0
  %342 = vmatprep.subr.mxu0 0.0
  %343 = vmatpush1.msra.mxu0 0.0
  %344 = vmatprep.subr.mxu0 0.0
  %345 = vmatpush1.msra.mxu0 0.0
  %346 = vmatprep.subr.mxu0 0.0
  %347 = vmatpush1.msra.mxu0 0.0
  %348 = vmatprep.subr.mxu0 0.0
  %349 = vmatpush1.msra.mxu0 0.0
  %350 = vmatprep.subr.mxu0 0.0
  %351 = vmatpush1.msra.mxu0 0.0
  %352 = vmatprep.subr.mxu0 0.0
  %353 = vmatpush1.msra.mxu0 0.0
  %354 = vmatprep.subr.mxu0 0.0
  %355 = vmatpush1.msra.mxu0 0.0
  %356 = vmatprep.subr.mxu0 0.0
  %357 = vmatpush1.msra.mxu0 0.0
  %358 = vmatprep.subr.mxu0 0.0
  %359 = vmatpush1.msra.mxu0 0.0
  %360 = vmatprep.subr.mxu0 0.0
  %361 = vmatpush1.msra.mxu0 0.0
  %362 = vmatprep.subr.mxu0 0.0
  %363 = vmatpush1.msra.mxu0 0.0
  %364 = vmatprep.subr.mxu0 0.0
  %365 = vmatpush1.msra.mxu0 0.0
  %366 = vmatprep.mubr.f32.mxu0 0.0
  %367 = vmatmul.mubr.f32.gmra.mrb[0].mxu0 %v300
  %v368 = vpop.f32.mrb[0].mxu0
  %v369 = vadd.f32 %v296, %v368
  %v370 = vpop.f32.mrb[0].mxu0
  %371 = vdwg.mxu0
  %vm372 = vcmask 125952
  %373 = vst.msk [vmem:[%s7] sm:$0xf] %vm372, %v51
  %374 = vst.msk [vmem:[%s7 + $0x4] sm:$0xff] %vm149, %v369
  %s375 = scalar_lea.vmem %s0, 4
  %v376 = vld [vmem:[%s375] sm:$0xf]
  %v377 = vmax.f32 %v376, 0.0
  %v379 = vsel %vm62, %v377, 0
  %381 = vmatprep.subr.mxu0 0.0
  %382 = vmatpush1.msra.mxu0 %v379
  %383 = vmatprep.subr.mxu0 0.0
  %384 = vmatpush1.msra.mxu0 0.0
  %385 = vmatprep.subr.mxu0 0.0
  %386 = vmatpush1.msra.mxu0 0.0
  %387 = vmatprep.subr.mxu0 0.0
  %388 = vmatpush1.msra.mxu0 0.0
  %389 = vmatprep.subr.mxu0 0.0
  %390 = vmatpush1.msra.mxu0 0.0
  %391 = vmatprep.subr.mxu0 0.0
  %392 = vmatpush1.msra.mxu0 0.0
  %393 = vmatprep.subr.mxu0 0.0
  %394 = vmatpush1.msra.mxu0 0.0
  %395 = vmatprep.subr.mxu0 0.0
  %396 = vmatpush1.msra.mxu0 0.0
  %397 = vmatprep.subr.mxu0 0.0
  %398 = vmatpush1.msra.mxu0 0.0
  %399 = vmatprep.subr.mxu0 0.0
  %400 = vmatpush1.msra.mxu0 0.0
  %401 = vmatprep.subr.mxu0 0.0
  %402 = vmatpush1.msra.mxu0 0.0
  %403 = vmatprep.subr.mxu0 0.0
  %404 = vmatpush1.msra.mxu0 0.0
  %405 = vmatprep.subr.mxu0 0.0
  %406 = vmatpush1.msra.mxu0 0.0
  %407 = vmatprep.subr.mxu0 0.0
  %408 = vmatpush1.msra.mxu0 0.0
  %409 = vmatprep.subr.mxu0 0.0
  %410 = vmatpush1.msra.mxu0 0.0
  %411 = vmatprep.subr.mxu0 0.0
  %412 = vmatpush1.msra.mxu0 0.0
  %413 = vmatprep.subr.mxu0 0.0
  %414 = vmatpush1.msra.mxu0 0.0
  %415 = vmatprep.subr.mxu0 0.0
  %416 = vmatpush1.msra.mxu0 0.0
  %417 = vmatprep.subr.mxu0 0.0
  %418 = vmatpush1.msra.mxu0 0.0
  %419 = vmatprep.subr.mxu0 0.0
  %420 = vmatpush1.msra.mxu0 0.0
  %421 = vmatprep.subr.mxu0 0.0
  %422 = vmatpush1.msra.mxu0 0.0
  %423 = vmatprep.subr.mxu0 0.0
  %424 = vmatpush1.msra.mxu0 0.0
  %425 = vmatprep.subr.mxu0 0.0
  %426 = vmatpush1.msra.mxu0 0.0
  %427 = vmatprep.subr.mxu0 0.0
  %428 = vmatpush1.msra.mxu0 0.0
  %429 = vmatprep.subr.mxu0 0.0
  %430 = vmatpush1.msra.mxu0 0.0
  %431 = vmatprep.subr.mxu0 0.0
  %432 = vmatpush1.msra.mxu0 0.0
  %433 = vmatprep.subr.mxu0 0.0
  %434 = vmatpush1.msra.mxu0 0.0
  %435 = vmatprep.subr.mxu0 0.0
  %436 = vmatpush1.msra.mxu0 0.0
  %437 = vmatprep.subr.mxu0 0.0
  %438 = vmatpush1.msra.mxu0 0.0
  %439 = vmatprep.subr.mxu0 0.0
  %440 = vmatpush1.msra.mxu0 0.0
  %441 = vmatprep.subr.mxu0 0.0
  %442 = vmatpush1.msra.mxu0 0.0
  %443 = vmatprep.subr.mxu0 0.0
  %444 = vmatpush1.msra.mxu0 0.0
  %445 = vmatprep.mubr.f32.mxu0 0.0
  %446 = vmatmul.mubr.f32.gmra.mrb[0].mxu0 %v60
  %v447 = vpop.f32.mrb[0].mxu0
  %v448 = vadd.f32 %v56, %v447
  %v449 = vpop.f32.mrb[0].mxu0
  %450 = vdwg.mxu0
  %v451 = vmax.f32 %v448, 0.0
  %v452 = vmul.f32 %v451, %v140
  %v453 = vadd.f32 %v452, %v146
  %v455 = vsel %vm149, %v453, 0
  %457 = vmatprep.subr.mxu0 0.0
  %458 = vmatpush1.msra.mxu0 %v42
  %459 = vmatprep.subr.mxu0 0.0
  %460 = vmatpush1.msra.mxu0 %v43
  %461 = vmatprep.subr.mxu0 0.0
  %462 = vmatpush1.msra.mxu0 0.0
  %463 = vmatprep.subr.mxu0 0.0
  %464 = vmatpush1.msra.mxu0 0.0
  %465 = vmatprep.subr.mxu0 0.0
  %466 = vmatpush1.msra.mxu0 0.0
  %467 = vmatprep.subr.mxu0 0.0
  %468 = vmatpush1.msra.mxu0 0.0
  %469 = vmatprep.subr.mxu0 0.0
  %470 = vmatpush1.msra.mxu0 0.0
  %471 = vmatprep.subr.mxu0 0.0
  %472 = vmatpush1.msra.mxu0 0.0
  %473 = vmatprep.subr.mxu0 0.0
  %474 = vmatpush1.msra.mxu0 0.0
  %475 = vmatprep.subr.mxu0 0.0
  %476 = vmatpush1.msra.mxu0 0.0
  %477 = vmatprep.subr.mxu0 0.0
  %478 = vmatpush1.msra.mxu0 0.0
  %479 = vmatprep.subr.mxu0 0.0
  %480 = vmatpush1.msra.mxu0 0.0
  %481 = vmatprep.subr.mxu0 0.0
  %482 = vmatpush1.msra.mxu0 0.0
  %483 = vmatprep.subr.mxu0 0.0
  %484 = vmatpush1.msra.mxu0 0.0
  %485 = vmatprep.subr.mxu0 0.0
  %486 = vmatpush1.msra.mxu0 0.0
  %487 = vmatprep.subr.mxu0 0.0
  %488 = vmatpush1.msra.mxu0 0.0
  %489 = vmatprep.subr.mxu0 0.0
  %490 = vmatpush1.msra.mxu0 0.0
  %491 = vmatprep.subr.mxu0 0.0
  %492 = vmatpush1.msra.mxu0 0.0
  %493 = vmatprep.subr.mxu0 0.0
  %494 = vmatpush1.msra.mxu0 0.0
  %495 = vmatprep.subr.mxu0 0.0
  %496 = vmatpush1.msra.mxu0 0.0
  %497 = vmatprep.subr.mxu0 0.0
  %498 = vmatpush1.msra.mxu0 0.0
  %499 = vmatprep.subr.mxu0 0.0
  %500 = vmatpush1.msra.mxu0 0.0
  %501 = vmatprep.subr.mxu0 0.0
  %502 = vmatpush1.msra.mxu0 0.0
  %503 = vmatprep.subr.mxu0 0.0
  %504 = vmatpush1.msra.mxu0 0.0
  %505 = vmatprep.subr.mxu0 0.0
  %506 = vmatpush1.msra.mxu0 0.0
  %507 = vmatprep.subr.mxu0 0.0
  %508 = vmatpush1.msra.mxu0 0.0
  %509 = vmatprep.subr.mxu0 0.0
  %510 = vmatpush1.msra.mxu0 0.0
  %511 = vmatprep.subr.mxu0 0.0
  %512 = vmatpush1.msra.mxu0 0.0
  %513 = vmatprep.subr.mxu0 0.0
  %514 = vmatpush1.msra.mxu0 0.0
  %515 = vmatprep.subr.mxu0 0.0
  %516 = vmatpush1.msra.mxu0 0.0
  %517 = vmatprep.subr.mxu0 0.0
  %518 = vmatpush1.msra.mxu0 0.0
  %519 = vmatprep.subr.mxu0 0.0
  %520 = vmatpush1.msra.mxu0 0.0
  %521 = vmatprep.mubr.f32.mxu0 0.0
  %522 = vmatmul.mubr.f32.gmra.mrb[0].mxu0 %v455
  %v523 = vpop.f32.mrb[0].mxu0
  %v524 = vadd.f32 0.0, %v523
  %v525 = vpop.f32.mrb[0].mxu0
  %526 = vdwg.mxu0
  %527 = vmatprep.subr.mxu0 0.0
  %528 = vmatpush1.msra.mxu0 %v49
  %529 = vmatprep.subr.mxu0 0.0
  %530 = vmatpush1.msra.mxu0 %v50
  %531 = vmatprep.subr.mxu0 0.0
  %532 = vmatpush1.msra.mxu0 0.0
  %533 = vmatprep.subr.mxu0 0.0
  %534 = vmatpush1.msra.mxu0 0.0
  %535 = vmatprep.subr.mxu0 0.0
  %536 = vmatpush1.msra.mxu0 0.0
  %537 = vmatprep.subr.mxu0 0.0
  %538 = vmatpush1.msra.mxu0 0.0
  %539 = vmatprep.subr.mxu0 0.0
  %540 = vmatpush1.msra.mxu0 0.0
  %541 = vmatprep.subr.mxu0 0.0
  %542 = vmatpush1.msra.mxu0 0.0
  %543 = vmatprep.subr.mxu0 0.0
  %544 = vmatpush1.msra.mxu0 0.0
  %545 = vmatprep.subr.mxu0 0.0
  %546 = vmatpush1.msra.mxu0 0.0
  %547 = vmatprep.subr.mxu0 0.0
  %548 = vmatpush1.msra.mxu0 0.0
  %549 = vmatprep.subr.mxu0 0.0
  %550 = vmatpush1.msra.mxu0 0.0
  %551 = vmatprep.subr.mxu0 0.0
  %552 = vmatpush1.msra.mxu0 0.0
  %553 = vmatprep.subr.mxu0 0.0
  %554 = vmatpush1.msra.mxu0 0.0
  %555 = vmatprep.subr.mxu0 0.0
  %556 = vmatpush1.msra.mxu0 0.0
  %557 = vmatprep.subr.mxu0 0.0
  %558 = vmatpush1.msra.mxu0 0.0
  %559 = vmatprep.subr.mxu0 0.0
  %560 = vmatpush1.msra.mxu0 0.0
  %561 = vmatprep.subr.mxu0 0.0
  %562 = vmatpush1.msra.mxu0 0.0
  %563 = vmatprep.subr.mxu0 0.0
  %564 = vmatpush1.msra.mxu0 0.0
  %565 = vmatprep.subr.mxu0 0.0
  %566 = vmatpush1.msra.mxu0 0.0
  %567 = vmatprep.subr.mxu0 0.0
  %568 = vmatpush1.msra.mxu0 0.0
  %569 = vmatprep.subr.mxu0 0.0
  %570 = vmatpush1.msra.mxu0 0.0
  %571 = vmatprep.subr.mxu0 0.0
  %572 = vmatpush1.msra.mxu0 0.0
  %573 = vmatprep.subr.mxu0 0.0
  %574 = vmatpush1.msra.mxu0 0.0
  %575 = vmatprep.subr.mxu0 0.0
  %576 = vmatpush1.msra.mxu0 0.0
  %577 = vmatprep.subr.mxu0 0.0
  %578 = vmatpush1.msra.mxu0 0.0
  %579 = vmatprep.subr.mxu0 0.0
  %580 = vmatpush1.msra.mxu0 0.0
  %581 = vmatprep.subr.mxu0 0.0
  %582 = vmatpush1.msra.mxu0 0.0
  %583 = vmatprep.subr.mxu0 0.0
  %584 = vmatpush1.msra.mxu0 0.0
  %585 = vmatprep.subr.mxu0 0.0
  %586 = vmatpush1.msra.mxu0 0.0
  %587 = vmatprep.subr.mxu0 0.0
  %588 = vmatpush1.msra.mxu0 0.0
  %589 = vmatprep.subr.mxu0 0.0
  %590 = vmatpush1.msra.mxu0 0.0
  %591 = vmatprep.mubr.f32.mxu0 0.0
  %592 = vmatmul.mubr.f32.gmra.mrb[0].mxu0 %v455
  %v593 = vpop.f32.mrb[0].mxu0
  %v594 = vadd.f32 0.0, %v593
  %v595 = vpop.f32.mrb[0].mxu0
  %596 = vdwg.mxu0
  %597 = vmatprep.subr.mxu0 0.0
  %598 = vmatpush1.msra.mxu0 %v524
  %599 = vmatprep.subr.mxu0 0.0
  %600 = vmatpush1.msra.mxu0 %v453
  %601 = vmatprep.subr.mxu0 0.0
  %602 = vmatpush1.msra.mxu0 %v594
  %603 = vmatprep.subr.mxu0 0.0
  %604 = vmatpush1.msra.mxu0 0.0
  %605 = vmatprep.subr.mxu0 0.0
  %606 = vmatpush1.msra.mxu0 0.0
  %607 = vmatprep.subr.mxu0 0.0
  %608 = vmatpush1.msra.mxu0 0.0
  %609 = vmatprep.subr.mxu0 0.0
  %610 = vmatpush1.msra.mxu0 0.0
  %611 = vmatprep.subr.mxu0 0.0
  %612 = vmatpush1.msra.mxu0 0.0
  %613 = vmatprep.subr.mxu0 0.0
  %614 = vmatpush1.msra.mxu0 0.0
  %615 = vmatprep.subr.mxu0 0.0
  %616 = vmatpush1.msra.mxu0 0.0
  %617 = vmatprep.subr.mxu0 0.0
  %618 = vmatpush1.msra.mxu0 0.0
  %619 = vmatprep.subr.mxu0 0.0
  %620 = vmatpush1.msra.mxu0 0.0
  %621 = vmatprep.subr.mxu0 0.0
  %622 = vmatpush1.msra.mxu0 0.0
  %623 = vmatprep.subr.mxu0 0.0
  %624 = vmatpush1.msra.mxu0 0.0
  %625 = vmatprep.subr.mxu0 0.0
  %626 = vmatpush1.msra.mxu0 0.0
  %627 = vmatprep.subr.mxu0 0.0
  %628 = vmatpush1.msra.mxu0 0.0
  %629 = vmatprep.subr.mxu0 0.0
  %630 = vmatpush1.msra.mxu0 0.0
  %631 = vmatprep.subr.mxu0 0.0
  %632 = vmatpush1.msra.mxu0 0.0
  %633 = vmatprep.subr.mxu0 0.0
  %634 = vmatpush1.msra.mxu0 0.0
  %635 = vmatprep.subr.mxu0 0.0
  %636 = vmatpush1.msra.mxu0 0.0
  %637 = vmatprep.subr.mxu0 0.0
  %638 = vmatpush1.msra.mxu0 0.0
  %639 = vmatprep.subr.mxu0 0.0
  %640 = vmatpush1.msra.mxu0 0.0
  %641 = vmatprep.subr.mxu0 0.0
  %642 = vmatpush1.msra.mxu0 0.0
  %643 = vmatprep.subr.mxu0 0.0
  %644 = vmatpush1.msra.mxu0 0.0
  %645 = vmatprep.subr.mxu0 0.0
  %646 = vmatpush1.msra.mxu0 0.0
  %647 = vmatprep.subr.mxu0 0.0
  %648 = vmatpush1.msra.mxu0 0.0
  %649 = vmatprep.subr.mxu0 0.0
  %650 = vmatpush1.msra.mxu0 0.0
  %651 = vmatprep.subr.mxu0 0.0
  %652 = vmatpush1.msra.mxu0 0.0
  %653 = vmatprep.subr.mxu0 0.0
  %654 = vmatpush1.msra.mxu0 0.0
  %655 = vmatprep.subr.mxu0 0.0
  %656 = vmatpush1.msra.mxu0 0.0
  %657 = vmatprep.subr.mxu0 0.0
  %658 = vmatpush1.msra.mxu0 0.0
  %659 = vmatprep.subr.mxu0 0.0
  %660 = vmatpush1.msra.mxu0 0.0
  %661 = vmatprep.mubr.f32.mxu0 0.0
  %662 = vmatmul.mubr.f32.gmra.mrb[0].mxu0 %v300
  %v663 = vpop.f32.mrb[0].mxu0
  %v664 = vadd.f32 %v296, %v663
  %v665 = vpop.f32.mrb[0].mxu0
  %666 = vdwg.mxu0
  %s667 = scalar_lea.vmem %s7, 16
  %668 = vst.msk [vmem:[%s667] sm:$0xf] %vm372, %v376
  %669 = vst.msk [vmem:[%s667 + $0x4] sm:$0xff] %vm149, %v664
  // Predicated region
  $region30: #{dense_layer1d.1} parent=0 // pred_check
    _
  $region31: #{dense_layer1d.1} parent=0 // pred_check_branch
    %671 = sbr.rel (0) target = $region33
  $region32: #{dense_layer1d.1} parent=0 // pred_region
    _
  $region33: #{dense_layer1d.1} parent=0 // pred_fallthru
    _
  // Predicated region
  $region34: #{dense_layer1d.1} parent=0 // pred_check
    _
  $region35: #{dense_layer1d.1} parent=0 // pred_check_branch
    %673 = sbr.rel (0) target = $region37
  $region36: #{dense_layer1d.1} parent=0 // pred_region
    _
  $region37: #{dense_layer1d.1} parent=0 // pred_fallthru
    _

</llo_original>
